<compile_context>
chip_gen: v5e
topology: v5e:2x2
jax: 0.10.0
libtpu: 0.0.40
codegen_flags: <defaults>
</compile_context>

<pallas_src>
import jax
import jax.numpy as jnp
from jax.experimental import pallas as pl
from jax.experimental.pallas import tpu as pltpu

PROBABILITY = 1.0  # module default: probability = 1


def _make_kernel(probability, operation):
    """Build the masked-apply kernel: out = where(prob > u, op(x), x)."""

    def kernel(u_ref, x_ref, out_x_ref):
        # mask sampling: probability > rng.uniform(size=batch); one bool per
        # row, broadcast across the lane (feature) axis.
        apply = probability > u_ref[...]                 # (rows, 1) bool
        x = x_ref[...].astype(jnp.float32)               # fused `.float()` cast
        if operation is None:
            # TODO(synk): base Transform.operation is abstract (None); identity
            # stands in while keeping the where(mask, op(x), x) structure so a
            # real per-row-gated op can be dropped in.
            aug_x = x
        else:
            aug_x = operation(x)
        out_x_ref[...] = jnp.where(apply, aug_x, x)

    return kernel


def _tile_params():
    """Generation-gated block caps (rows, cols) + explicit VMEM limit.

    Blocks are lane-dense (cols a big multiple of 128); rows cap is a multiple
    of 32 so bf16/int8 packed inputs tile cleanly.  Targets ~4 MiB f32 output
    block on 64 MiB-VMEM chips (v7x) and ~8 MiB on 128 MiB chips (v5e/v6e);
    double-buffered in+out stays well under the requested vmem_limit.
    """
    try:
        vmem_cap = pltpu.get_tpu_info().vmem_capacity_bytes
    except Exception:  # no TPU info available -> conservative defaults
        vmem_cap = 64 << 20
    if vmem_cap > (64 << 20):          # v5e / v6e: 128 MiB physical VMEM
        return 256, 8192, 64 << 20     # 8 MiB f32 output block
    return 128, 8192, 44 << 20         # v7x: 64 MiB physical -> 4 MiB block


def transform_forward(x, uniforms, probability=PROBABILITY, operation=None,
                      force_kernel=False):
    """Equivalent of Transform(probability).forward(X) with X NCHW,
    y / aug_data / extra_param all None.

    Returns (out_X, out_y, num_valid, out_extra_param).
    """
    B = x.shape[0]
    F = 1
    for d in x.shape[1:]:
        F *= d

    # O(B) scalar results in plain JAX (no cross-iteration kernel state).
    out_y = jnp.zeros((B,), jnp.float32)                      # torch.zeros(B)
    num_valid = (probability > uniforms).sum().astype(jnp.int32)
    out_extra_param = None                                    # extra_param None

    # Base-class / identity case: the kernel would be a pure HBM copy of the
    # cast input -> short-circuit (removes ~100% of the runtime).
    if operation is None and not force_kernel:
        return x.astype(jnp.float32), out_y, num_valid, out_extra_param

    x_flat = x.reshape(B, F)                       # native dtype; cast in kernel
    u_col = uniforms.astype(jnp.float32).reshape(B, 1)

    row_cap, col_cap, vmem_limit = _tile_params()
    row_block = B if B <= row_cap else row_cap     # full dim or multiple of 32
    col_block = F if F <= col_cap else col_cap     # full dim or multiple of 128
    grid = (pl.cdiv(B, row_block), pl.cdiv(F, col_block))

    # In-place augmentation when the input is already f32 (same shape/dtype and
    # identical in/out index maps -> safe with the standard pipeline).
    aliases = {1: 0} if x_flat.dtype == jnp.float32 else {}

    out_x = pl.pallas_call(
        _make_kernel(probability, operation),
        grid_spec=pltpu.PrefetchScalarGridSpec(
            num_scalar_prefetch=0,
            grid=grid,
            in_specs=[
                # uniforms column: block index constant along the inner
                # (feature) axis -> DMA not re-issued per feature tile.
                pl.BlockSpec((row_block, 1), lambda i, j: (i, 0)),
                pl.BlockSpec((row_block, col_block), lambda i, j: (i, j)),
            ],
            out_specs=pl.BlockSpec((row_block, col_block), lambda i, j: (i, j)),
        ),
        out_shape=jax.ShapeDtypeStruct((B, F), jnp.float32),
        input_output_aliases=aliases,
        compiler_params=pltpu.CompilerParams(
            dimension_semantics=("parallel", "parallel"),  # megacore on v7x
            vmem_limit_bytes=vmem_limit,
        ),
    )(u_col, x_flat)

    return out_x.reshape(x.shape), out_y, num_valid, out_extra_param


if __name__ == "__main__":
    key = jax.random.PRNGKey(0)
    kx, ku = jax.random.split(key)

    B, C, H, W = 2, 4, 16, 16
    x = jax.random.normal(kx, (B, C, H, W), dtype=jnp.float32)
    # emulate self.rng.uniform(size=batch_size) deterministically
    uniforms = jax.random.uniform(ku, (B,), dtype=jnp.float32)
    xf = x.astype(jnp.float32)

    # Default (base-class) path: identity op -> short-circuited cast/clone.
    out_x0, out_y0, nv0, extra0 = transform_forward(x, uniforms)

    # Forced Pallas path, f32 input (exercises the in-place aliasing path).
    out_x1, out_y1, nv1, extra1 = transform_forward(x, uniforms, force_kernel=True)

    # Forced Pallas path, bf16 input (exercises the fused float32 cast).
    out_x2, _, _, _ = transform_forward(x.astype(jnp.bfloat16), uniforms,
                                        force_kernel=True)

    jax.block_until_ready((out_x0, out_x1, out_x2, out_y1, nv1))

    # correctness vs. the PyTorch semantics (probability=1, op abstract)
    assert out_x1.shape == (B, C, H, W) and out_x1.dtype == jnp.float32
    assert jnp.allclose(out_x0, xf) and jnp.allclose(out_x1, xf)
    assert jnp.allclose(out_x2, x.astype(jnp.bfloat16).astype(jnp.float32))
    assert out_y1.shape == (B,) and jnp.allclose(out_y1, jnp.zeros((B,)))
    assert int(nv0) == B and int(nv1) == B   # probability=1 -> whole batch masked
    assert extra0 is None and extra1 is None

    # Mask machinery sanity with a plugged-in op: p=0 -> untouched, p=1 -> op'd.
    out_x3, _, nv3, _ = transform_forward(x, uniforms, probability=0.0,
                                          operation=lambda v: v + 1.0)
    out_x4, _, nv4, _ = transform_forward(x, uniforms, probability=1.0,
                                          operation=lambda v: v + 1.0)
    jax.block_until_ready((out_x3, out_x4))
    assert jnp.allclose(out_x3, xf) and int(nv3) == 0
    assert jnp.allclose(out_x4, xf + 1.0) and int(nv4) == B

    print("KERNEL_OK")
</pallas_src>

<mosaic_0001>
module attributes {stable_mosaic.version = 11 : i64} {
  func.func @kernel(%arg0: i32, %arg1: i32, %arg2: memref<2x1xf32, #tpu.memory_space<vmem>>, %arg3: memref<2x1024xf32, #tpu.memory_space<vmem>>, %arg4: memref<2x1024xf32, #tpu.memory_space<vmem>>) attributes {dimension_semantics = [#tpu.dimension_semantics<parallel>, #tpu.dimension_semantics<parallel>], iteration_bounds = array<i64: 1, 1>, scalar_prefetch = 0 : i64, scratch_operands = 0 : i64, tpu.core_type = #tpu.core_type<tc>, window_params = [{transform_indices = @transform_0, window_bounds = array<i64: 2, 1>}, {transform_indices = @transform_1, window_bounds = array<i64: 2, 1024>}, {transform_indices = @transform_2, window_bounds = array<i64: 2, 1024>}]} {
    %c0 = arith.constant 0 : index
    %c0_0 = arith.constant 0 : index
    %0 = vector.load %arg2[%c0, %c0_0] : memref<2x1xf32, #tpu.memory_space<vmem>>, vector<2x1xf32>
    %cst = arith.constant 1.000000e+00 : f32
    %1 = vector.broadcast %cst : f32 to vector<2x1xf32>
    %2 = arith.cmpf olt, %0, %1 : vector<2x1xf32>
    %c0_1 = arith.constant 0 : index
    %c0_2 = arith.constant 0 : index
    %3 = vector.load %arg3[%c0_1, %c0_2] : memref<2x1024xf32, #tpu.memory_space<vmem>>, vector<2x1024xf32>
    %4 = vector.shape_cast %2 : vector<2x1xi1> to vector<2x1xi1>
    %5 = vector.broadcast %4 : vector<2x1xi1> to vector<2x1024xi1>
    %6 = arith.select %5, %3, %3 : vector<2x1024xi1>, vector<2x1024xf32>
    %c0_3 = arith.constant 0 : index
    %c0_4 = arith.constant 0 : index
    %7 = vector.load %arg4[%c0_3, %c0_4] : memref<2x1024xf32, #tpu.memory_space<vmem>>, vector<2x1024xf32>
    tpu.vector_store %arg4[%c0_3, %c0_4], %6 {strides = array<i32>} : memref<2x1024xf32, #tpu.memory_space<vmem>>, vector<2x1024xf32>,
    return
  }
  func.func @transform_0(%arg0: i32, %arg1: i32) -> (i32, i32) {
    %c0_i32 = arith.constant 0 : i32
    %c0_i32_0 = arith.constant 0 : i32
    return %arg0, %c0_i32 : i32, i32
  }
  func.func @transform_1(%arg0: i32, %arg1: i32) -> (i32, i32) {
    %c0_i32 = arith.constant 0 : i32
    return %arg0, %arg1 : i32, i32
  }
  func.func @transform_2(%arg0: i32, %arg1: i32) -> (i32, i32) {
    %c0_i32 = arith.constant 0 : i32
    return %arg0, %arg1 : i32, i32
  }
}

</mosaic_0001>

<llo_original>
// kernel: tpu_custom_call.1
$region0: #{tpu_custom_call.1}
  #allocation0 [shape = 'u32[]', space=smem, size = 0x4, offset = 0x4, fixed_abs, tag = 'smem constant byte address 0x4 - core index']
  #allocation1 [shape = 'u32[72,128]{1,0:T(1,128)}', space=vmem, size = 0x9000, scoped, tag = 'internal scratch']
  %s0 = inlined_call_operand.vmem [shape: f32[2,1], index: 0, kind: input, shape index: {}]
  %s1 = inlined_call_operand.hbm [shape: f32[2,1024], index: 1, kind: input, shape index: {}, may-alias: {1,2}]
  %s2 = inlined_call_operand.hbm [shape: f32[2,1024], index: 2, kind: output, shape index: {}, may-alias: {1,2}]
  %s3 = sld [smem:[#allocation0]]
  $region22: #{tpu_custom_call.1} parent=0
    _
  %s5 = ssub.s32 1, %s3
  %s6 = scalar_select 0, %s5, %s3
  $region1: #{tpu_custom_call.1} parent=0
    #allocation2 [shape = 'u8[8192]{0}', space=vmem, size = 0x2000, scoped, tag = 'input window, operand 1, single buffered']
    #allocation3 [shape = 's32[1]{0}', space=sflag, size = 0x4, scoped, tag = 'scoped memory for tpu_custom_call.1']
    #allocation4 [shape = 's32[1]{0}', space=sflag, size = 0x4, scoped, tag = 'scoped memory for tpu_custom_call.1']
    #allocation5 [shape = 'u8[8192]{0}', space=vmem, size = 0x2000, scoped, tag = 'output window, operand 0, single buffered']
    %7 = vsyncpa [#allocation3], 0
    %8 = vsyncpa [#allocation4], 0
    // Predicated region
    $region2: #{tpu_custom_call.1} parent=1 // pred_check
      _
    $region3: #{tpu_custom_call.1} parent=1 // pred_check_branch
      %10 = sbr.rel (0) target = $region5
    $region4: #{tpu_custom_call.1} parent=1 // pred_region
      _
    $region5: #{tpu_custom_call.1} parent=1 // pred_fallthru
      _
    // Predicated region
    $region6: #{tpu_custom_call.1} parent=1 // pred_check
      _
    $region7: #{tpu_custom_call.1} parent=1 // pred_check_branch
      %12 = sbr.rel (0) target = $region9
    $region8: #{tpu_custom_call.1} parent=1 // pred_region
      %14 = vsyncadd [#allocation3], 0
      %s16 = sshll.u32 %s1, 4
      %s17 = int_to_ptr.hbm [resolvable:$true] %s16
      %s18 = sshll.u32 [#allocation2], 4
      %s19 = int_to_ptr.vmem [resolvable:$true] %s18
      %21 = dma.hbm_to_vmem [thread:$0]  %s17, 256, %s19, [#allocation3]
    $region9: #{tpu_custom_call.1} parent=1 // pred_fallthru
      _
    // Predicated region
    $region10: #{tpu_custom_call.1} parent=1 // pred_check
      _
    $region11: #{tpu_custom_call.1} parent=1 // pred_check_branch
      %23 = sbr.rel (0) target = $region13
    $region12: #{tpu_custom_call.1} parent=1 // pred_region
      %25 = dma.done [#allocation3], 256
    $region13: #{tpu_custom_call.1} parent=1 // pred_fallthru
      _
    %v26 = vld [vmem:[#allocation2] sm:$0xff]
    %v27 = vld [vmem:[#allocation2 + $0x8] sm:$0xff]
    %28 = vst [vmem:[#allocation5] sm:$0xff] %v26
    %29 = vst [vmem:[#allocation5 + $0x8] sm:$0xff] %v27
    // Predicated region
    $region14: #{tpu_custom_call.1} parent=1 // pred_check
      _
    $region15: #{tpu_custom_call.1} parent=1 // pred_check_branch
      %31 = sbr.rel (0) target = $region17
    $region16: #{tpu_custom_call.1} parent=1 // pred_region
      %33 = vsyncadd [#allocation4], 0
      %s35 = sshll.u32 [#allocation5], 4
      %s36 = int_to_ptr.vmem [resolvable:$true] %s35
      %s37 = sshll.u32 %s2, 4
      %s38 = int_to_ptr.hbm [resolvable:$true] %s37
      %40 = dma.vmem_to_hbm [thread:$0]  %s36, 256, %s38, [#allocation4]
    $region17: #{tpu_custom_call.1} parent=1 // pred_fallthru
      _
    // Predicated region
    $region18: #{tpu_custom_call.1} parent=1 // pred_check
      _
    $region19: #{tpu_custom_call.1} parent=1 // pred_check_branch
      %42 = sbr.rel (0) target = $region21
    $region20: #{tpu_custom_call.1} parent=1 // pred_region
      %44 = dma.done [#allocation4], 256
    $region21: #{tpu_custom_call.1} parent=1 // pred_fallthru
      _
    %45 = vsyncpa [#allocation3], 1
    %46 = vsyncpa [#allocation4], 1

</llo_original>
